<compile_context>
chip_gen: v5e
topology: v5e:2x2
jax: 0.10.0
libtpu: 0.0.40
codegen_flags: <defaults>
</compile_context>

<pallas_src>
import jax
import jax.numpy as jnp
from jax.experimental import pallas as pl
from jax.experimental.pallas import tpu as pltpu

HIDDEN_SIZE = 32
INPUT_SIZE = 3
N_LAYERS = 1
OUTPUT_SIZE = 5


def rnn_kernel(x_ref, wih_ref, whh_ref, b_ref, wout_ref, bout_ref, out_ref):
    """x_ref: (B, T*Din) batch-major flattened input (row b = [x[b,0,:], x[b,1,:], ...]).

    Computes h_T of the tanh RNN (h_0 = 0) and the fused final Linear output.
    """
    B = x_ref.shape[0]
    Din, H = wih_ref.shape
    T = x_ref.shape[1] // Din

    x = x_ref[...]                                   # (B, T*Din)
    wih = wih_ref[...]                               # (Din, H)
    whh = whh_ref[...]                               # (H, H), read once -> RHS stays staged
    bias = jnp.broadcast_to(b_ref[...], (B, H))      # hoisted broadcast of (b_ih + b_hh)

    # Time-parallel input projection on the VPU (K = Din = 3): three broadcast
    # multiply-adds per timestep instead of a skinny MXU matmul.  Every
    # x_proj[t] is an independent (B, H) value, so the serial recurrence never
    # slices a shared buffer (no cross-sublane shuffles on the critical path),
    # and all of this work can overlap the recurrence's MXU steps.
    x_proj = []
    for t in range(T):
        acc = bias
        for d in range(Din):
            acc = acc + x[:, t * Din + d : t * Din + d + 1] * wih[d : d + 1, :]
        x_proj.append(acc)

    # Serial recurrence, fully unrolled (T static & small); h stays in vregs.
    # h_0 == 0, so step 0 needs no h @ Whh matmul.
    # (v6e option: h.astype(bf16) @ whh.astype(bf16) with f32 accumulation.)
    h = jnp.tanh(x_proj[0])
    for t in range(1, T):
        h = jnp.tanh(
            x_proj[t] + jnp.dot(h, whh, preferred_element_type=jnp.float32)
        )

    # Fused final Linear on the last hidden state.  Dout=5 -> masked store;
    # negligible at this size (only widen if profiling ever shows it).
    out_ref[...] = (
        jnp.dot(h, wout_ref[...], preferred_element_type=jnp.float32)
        + bout_ref[...]
    ).astype(out_ref.dtype)


def prepare_params(params):
    """One-time parameter prep (hoisted out of the per-call forward path)."""
    return {
        "wih_t": params["w_ih"].T,                                        # (Din, H)
        "whh_t": params["w_hh"].T,                                        # (H, H)
        "bias": (params["b_ih"] + params["b_hh"]).reshape(1, HIDDEN_SIZE),
        "wout_t": params["w_out"].T,                                      # (H, Dout)
        "bout": params["b_out"].reshape(1, OUTPUT_SIZE),
    }


def rnn_forward(x, prep):
    """x: (B, T, D_in) float32.  Returns (B, OUTPUT_SIZE) float32."""
    B, T, Din = x.shape
    Dout = OUTPUT_SIZE

    # Free contiguous reshape only -- no transpose, no padding, no other ops.
    x_flat = x.reshape(B, T * Din)

    vmem = pl.BlockSpec(memory_space=pltpu.MemorySpace.VMEM)

    return pl.pallas_call(
        rnn_kernel,
        out_shape=jax.ShapeDtypeStruct((B, Dout), jnp.float32),
        in_specs=[vmem, vmem, vmem, vmem, vmem, vmem],
        out_specs=vmem,
    )(x_flat, prep["wih_t"], prep["whh_t"], prep["bias"], prep["wout_t"], prep["bout"])


def rnn_reference(x, params):
    """Pure-JAX reference matching torch.nn.RNN(tanh) + Linear semantics."""
    B, T, Din = x.shape
    h = jnp.zeros((B, HIDDEN_SIZE), jnp.float32)

    def step(h, x_t):
        h_new = jnp.tanh(x_t @ params["w_ih"].T + params["b_ih"]
                         + h @ params["w_hh"].T + params["b_hh"])
        return h_new, h_new

    h_last, _ = jax.lax.scan(step, h, jnp.transpose(x, (1, 0, 2)))
    return h_last @ params["w_out"].T + params["b_out"]


def init_params(key):
    """Deterministic init matching PyTorch shapes (U(-1/sqrt(H), 1/sqrt(H)))."""
    ks = jax.random.split(key, 6)
    bound = 1.0 / (HIDDEN_SIZE ** 0.5)
    u = lambda k, shape: jax.random.uniform(k, shape, jnp.float32, -bound, bound)
    return {
        "w_ih": u(ks[0], (HIDDEN_SIZE, INPUT_SIZE)),     # rnn.weight_ih_l0
        "w_hh": u(ks[1], (HIDDEN_SIZE, HIDDEN_SIZE)),    # rnn.weight_hh_l0
        "b_ih": u(ks[2], (HIDDEN_SIZE,)),                # rnn.bias_ih_l0
        "b_hh": u(ks[3], (HIDDEN_SIZE,)),                # rnn.bias_hh_l0
        "w_out": u(ks[4], (OUTPUT_SIZE, HIDDEN_SIZE)),   # linear.weight
        "b_out": u(ks[5], (OUTPUT_SIZE,)),               # linear.bias
    }


if __name__ == "__main__":
    key = jax.random.PRNGKey(0)
    k_x, k_p = jax.random.split(key)

    B, T = 4, 8
    x = jax.random.normal(k_x, (B, T, INPUT_SIZE), jnp.float32)
    params = init_params(k_p)

    # One-time prep (eager, outside the jitted forward).
    prep = prepare_params(params)

    fwd = jax.jit(rnn_forward)
    out = jax.block_until_ready(fwd(x, prep))

    ref = rnn_reference(x, params)
    assert out.shape == (B, OUTPUT_SIZE)
    assert jnp.allclose(out, ref, rtol=1e-4, atol=1e-4), "mismatch vs reference"

    print("KERNEL_OK")
</pallas_src>

<mosaic_0001>
module attributes {stable_mosaic.version = 11 : i64} {
  func.func @rnn_kernel(%arg0: memref<4x24xf32, #tpu.memory_space<vmem>>, %arg1: memref<3x32xf32, #tpu.memory_space<vmem>>, %arg2: memref<32x32xf32, #tpu.memory_space<vmem>>, %arg3: memref<1x32xf32, #tpu.memory_space<vmem>>, %arg4: memref<32x5xf32, #tpu.memory_space<vmem>>, %arg5: memref<1x5xf32, #tpu.memory_space<vmem>>, %arg6: memref<4x5xf32, #tpu.memory_space<vmem>>) attributes {dimension_semantics = [], scalar_prefetch = 0 : i64, scratch_operands = 0 : i64, tpu.core_type = #tpu.core_type<tc>} {
    %c0 = arith.constant 0 : index
    %c0_0 = arith.constant 0 : index
    %0 = vector.load %arg0[%c0, %c0_0] : memref<4x24xf32, #tpu.memory_space<vmem>>, vector<4x24xf32>
    %c0_1 = arith.constant 0 : index
    %c0_2 = arith.constant 0 : index
    %1 = vector.load %arg1[%c0_1, %c0_2] : memref<3x32xf32, #tpu.memory_space<vmem>>, vector<3x32xf32>
    %c0_3 = arith.constant 0 : index
    %c0_4 = arith.constant 0 : index
    %2 = vector.load %arg2[%c0_3, %c0_4] : memref<32x32xf32, #tpu.memory_space<vmem>>, vector<32x32xf32>
    %c0_5 = arith.constant 0 : index
    %c0_6 = arith.constant 0 : index
    %3 = vector.load %arg3[%c0_5, %c0_6] : memref<1x32xf32, #tpu.memory_space<vmem>>, vector<1x32xf32>
    %4 = vector.shape_cast %3 : vector<1x32xf32> to vector<1x32xf32>
    %5 = vector.broadcast %4 : vector<1x32xf32> to vector<4x32xf32>
    %6 = vector.extract_strided_slice %0 {offsets = [0, 0], sizes = [4, 1], strides = [1, 1]} : vector<4x24xf32> to vector<4x1xf32>
    %7 = vector.extract_strided_slice %1 {offsets = [0, 0], sizes = [1, 32], strides = [1, 1]} : vector<3x32xf32> to vector<1x32xf32>
    %8 = vector.broadcast %6 : vector<4x1xf32> to vector<4x32xf32>
    %9 = vector.broadcast %7 : vector<1x32xf32> to vector<4x32xf32>
    %10 = arith.mulf %8, %9 : vector<4x32xf32>
    %11 = arith.addf %5, %10 : vector<4x32xf32>
    %12 = vector.extract_strided_slice %0 {offsets = [0, 1], sizes = [4, 1], strides = [1, 1]} : vector<4x24xf32> to vector<4x1xf32>
    %13 = vector.extract_strided_slice %1 {offsets = [1, 0], sizes = [1, 32], strides = [1, 1]} : vector<3x32xf32> to vector<1x32xf32>
    %14 = vector.broadcast %12 : vector<4x1xf32> to vector<4x32xf32>
    %15 = vector.broadcast %13 : vector<1x32xf32> to vector<4x32xf32>
    %16 = arith.mulf %14, %15 : vector<4x32xf32>
    %17 = arith.addf %11, %16 : vector<4x32xf32>
    %18 = vector.extract_strided_slice %0 {offsets = [0, 2], sizes = [4, 1], strides = [1, 1]} : vector<4x24xf32> to vector<4x1xf32>
    %19 = vector.extract_strided_slice %1 {offsets = [2, 0], sizes = [1, 32], strides = [1, 1]} : vector<3x32xf32> to vector<1x32xf32>
    %20 = vector.broadcast %18 : vector<4x1xf32> to vector<4x32xf32>
    %21 = vector.broadcast %19 : vector<1x32xf32> to vector<4x32xf32>
    %22 = arith.mulf %20, %21 : vector<4x32xf32>
    %23 = arith.addf %17, %22 : vector<4x32xf32>
    %24 = vector.extract_strided_slice %0 {offsets = [0, 3], sizes = [4, 1], strides = [1, 1]} : vector<4x24xf32> to vector<4x1xf32>
    %25 = vector.extract_strided_slice %1 {offsets = [0, 0], sizes = [1, 32], strides = [1, 1]} : vector<3x32xf32> to vector<1x32xf32>
    %26 = vector.broadcast %24 : vector<4x1xf32> to vector<4x32xf32>
    %27 = vector.broadcast %25 : vector<1x32xf32> to vector<4x32xf32>
    %28 = arith.mulf %26, %27 : vector<4x32xf32>
    %29 = arith.addf %5, %28 : vector<4x32xf32>
    %30 = vector.extract_strided_slice %0 {offsets = [0, 4], sizes = [4, 1], strides = [1, 1]} : vector<4x24xf32> to vector<4x1xf32>
    %31 = vector.extract_strided_slice %1 {offsets = [1, 0], sizes = [1, 32], strides = [1, 1]} : vector<3x32xf32> to vector<1x32xf32>
    %32 = vector.broadcast %30 : vector<4x1xf32> to vector<4x32xf32>
    %33 = vector.broadcast %31 : vector<1x32xf32> to vector<4x32xf32>
    %34 = arith.mulf %32, %33 : vector<4x32xf32>
    %35 = arith.addf %29, %34 : vector<4x32xf32>
    %36 = vector.extract_strided_slice %0 {offsets = [0, 5], sizes = [4, 1], strides = [1, 1]} : vector<4x24xf32> to vector<4x1xf32>
    %37 = vector.extract_strided_slice %1 {offsets = [2, 0], sizes = [1, 32], strides = [1, 1]} : vector<3x32xf32> to vector<1x32xf32>
    %38 = vector.broadcast %36 : vector<4x1xf32> to vector<4x32xf32>
    %39 = vector.broadcast %37 : vector<1x32xf32> to vector<4x32xf32>
    %40 = arith.mulf %38, %39 : vector<4x32xf32>
    %41 = arith.addf %35, %40 : vector<4x32xf32>
    %42 = vector.extract_strided_slice %0 {offsets = [0, 6], sizes = [4, 1], strides = [1, 1]} : vector<4x24xf32> to vector<4x1xf32>
    %43 = vector.extract_strided_slice %1 {offsets = [0, 0], sizes = [1, 32], strides = [1, 1]} : vector<3x32xf32> to vector<1x32xf32>
    %44 = vector.broadcast %42 : vector<4x1xf32> to vector<4x32xf32>
    %45 = vector.broadcast %43 : vector<1x32xf32> to vector<4x32xf32>
    %46 = arith.mulf %44, %45 : vector<4x32xf32>
    %47 = arith.addf %5, %46 : vector<4x32xf32>
    %48 = vector.extract_strided_slice %0 {offsets = [0, 7], sizes = [4, 1], strides = [1, 1]} : vector<4x24xf32> to vector<4x1xf32>
    %49 = vector.extract_strided_slice %1 {offsets = [1, 0], sizes = [1, 32], strides = [1, 1]} : vector<3x32xf32> to vector<1x32xf32>
    %50 = vector.broadcast %48 : vector<4x1xf32> to vector<4x32xf32>
    %51 = vector.broadcast %49 : vector<1x32xf32> to vector<4x32xf32>
    %52 = arith.mulf %50, %51 : vector<4x32xf32>
    %53 = arith.addf %47, %52 : vector<4x32xf32>
    %54 = vector.extract_strided_slice %0 {offsets = [0, 8], sizes = [4, 1], strides = [1, 1]} : vector<4x24xf32> to vector<4x1xf32>
    %55 = vector.extract_strided_slice %1 {offsets = [2, 0], sizes = [1, 32], strides = [1, 1]} : vector<3x32xf32> to vector<1x32xf32>
    %56 = vector.broadcast %54 : vector<4x1xf32> to vector<4x32xf32>
    %57 = vector.broadcast %55 : vector<1x32xf32> to vector<4x32xf32>
    %58 = arith.mulf %56, %57 : vector<4x32xf32>
    %59 = arith.addf %53, %58 : vector<4x32xf32>
    %60 = vector.extract_strided_slice %0 {offsets = [0, 9], sizes = [4, 1], strides = [1, 1]} : vector<4x24xf32> to vector<4x1xf32>
    %61 = vector.extract_strided_slice %1 {offsets = [0, 0], sizes = [1, 32], strides = [1, 1]} : vector<3x32xf32> to vector<1x32xf32>
    %62 = vector.broadcast %60 : vector<4x1xf32> to vector<4x32xf32>
    %63 = vector.broadcast %61 : vector<1x32xf32> to vector<4x32xf32>
    %64 = arith.mulf %62, %63 : vector<4x32xf32>
    %65 = arith.addf %5, %64 : vector<4x32xf32>
    %66 = vector.extract_strided_slice %0 {offsets = [0, 10], sizes = [4, 1], strides = [1, 1]} : vector<4x24xf32> to vector<4x1xf32>
    %67 = vector.extract_strided_slice %1 {offsets = [1, 0], sizes = [1, 32], strides = [1, 1]} : vector<3x32xf32> to vector<1x32xf32>
    %68 = vector.broadcast %66 : vector<4x1xf32> to vector<4x32xf32>
    %69 = vector.broadcast %67 : vector<1x32xf32> to vector<4x32xf32>
    %70 = arith.mulf %68, %69 : vector<4x32xf32>
    %71 = arith.addf %65, %70 : vector<4x32xf32>
    %72 = vector.extract_strided_slice %0 {offsets = [0, 11], sizes = [4, 1], strides = [1, 1]} : vector<4x24xf32> to vector<4x1xf32>
    %73 = vector.extract_strided_slice %1 {offsets = [2, 0], sizes = [1, 32], strides = [1, 1]} : vector<3x32xf32> to vector<1x32xf32>
    %74 = vector.broadcast %72 : vector<4x1xf32> to vector<4x32xf32>
    %75 = vector.broadcast %73 : vector<1x32xf32> to vector<4x32xf32>
    %76 = arith.mulf %74, %75 : vector<4x32xf32>
    %77 = arith.addf %71, %76 : vector<4x32xf32>
    %78 = vector.extract_strided_slice %0 {offsets = [0, 12], sizes = [4, 1], strides = [1, 1]} : vector<4x24xf32> to vector<4x1xf32>
    %79 = vector.extract_strided_slice %1 {offsets = [0, 0], sizes = [1, 32], strides = [1, 1]} : vector<3x32xf32> to vector<1x32xf32>
    %80 = vector.broadcast %78 : vector<4x1xf32> to vector<4x32xf32>
    %81 = vector.broadcast %79 : vector<1x32xf32> to vector<4x32xf32>
    %82 = arith.mulf %80, %81 : vector<4x32xf32>
    %83 = arith.addf %5, %82 : vector<4x32xf32>
    %84 = vector.extract_strided_slice %0 {offsets = [0, 13], sizes = [4, 1], strides = [1, 1]} : vector<4x24xf32> to vector<4x1xf32>
    %85 = vector.extract_strided_slice %1 {offsets = [1, 0], sizes = [1, 32], strides = [1, 1]} : vector<3x32xf32> to vector<1x32xf32>
    %86 = vector.broadcast %84 : vector<4x1xf32> to vector<4x32xf32>
    %87 = vector.broadcast %85 : vector<1x32xf32> to vector<4x32xf32>
    %88 = arith.mulf %86, %87 : vector<4x32xf32>
    %89 = arith.addf %83, %88 : vector<4x32xf32>
    %90 = vector.extract_strided_slice %0 {offsets = [0, 14], sizes = [4, 1], strides = [1, 1]} : vector<4x24xf32> to vector<4x1xf32>
    %91 = vector.extract_strided_slice %1 {offsets = [2, 0], sizes = [1, 32], strides = [1, 1]} : vector<3x32xf32> to vector<1x32xf32>
    %92 = vector.broadcast %90 : vector<4x1xf32> to vector<4x32xf32>
    %93 = vector.broadcast %91 : vector<1x32xf32> to vector<4x32xf32>
    %94 = arith.mulf %92, %93 : vector<4x32xf32>
    %95 = arith.addf %89, %94 : vector<4x32xf32>
    %96 = vector.extract_strided_slice %0 {offsets = [0, 15], sizes = [4, 1], strides = [1, 1]} : vector<4x24xf32> to vector<4x1xf32>
    %97 = vector.extract_strided_slice %1 {offsets = [0, 0], sizes = [1, 32], strides = [1, 1]} : vector<3x32xf32> to vector<1x32xf32>
    %98 = vector.broadcast %96 : vector<4x1xf32> to vector<4x32xf32>
    %99 = vector.broadcast %97 : vector<1x32xf32> to vector<4x32xf32>
    %100 = arith.mulf %98, %99 : vector<4x32xf32>
    %101 = arith.addf %5, %100 : vector<4x32xf32>
    %102 = vector.extract_strided_slice %0 {offsets = [0, 16], sizes = [4, 1], strides = [1, 1]} : vector<4x24xf32> to vector<4x1xf32>
    %103 = vector.extract_strided_slice %1 {offsets = [1, 0], sizes = [1, 32], strides = [1, 1]} : vector<3x32xf32> to vector<1x32xf32>
    %104 = vector.broadcast %102 : vector<4x1xf32> to vector<4x32xf32>
    %105 = vector.broadcast %103 : vector<1x32xf32> to vector<4x32xf32>
    %106 = arith.mulf %104, %105 : vector<4x32xf32>
    %107 = arith.addf %101, %106 : vector<4x32xf32>
    %108 = vector.extract_strided_slice %0 {offsets = [0, 17], sizes = [4, 1], strides = [1, 1]} : vector<4x24xf32> to vector<4x1xf32>
    %109 = vector.extract_strided_slice %1 {offsets = [2, 0], sizes = [1, 32], strides = [1, 1]} : vector<3x32xf32> to vector<1x32xf32>
    %110 = vector.broadcast %108 : vector<4x1xf32> to vector<4x32xf32>
    %111 = vector.broadcast %109 : vector<1x32xf32> to vector<4x32xf32>
    %112 = arith.mulf %110, %111 : vector<4x32xf32>
    %113 = arith.addf %107, %112 : vector<4x32xf32>
    %114 = vector.extract_strided_slice %0 {offsets = [0, 18], sizes = [4, 1], strides = [1, 1]} : vector<4x24xf32> to vector<4x1xf32>
    %115 = vector.extract_strided_slice %1 {offsets = [0, 0], sizes = [1, 32], strides = [1, 1]} : vector<3x32xf32> to vector<1x32xf32>
    %116 = vector.broadcast %114 : vector<4x1xf32> to vector<4x32xf32>
    %117 = vector.broadcast %115 : vector<1x32xf32> to vector<4x32xf32>
    %118 = arith.mulf %116, %117 : vector<4x32xf32>
    %119 = arith.addf %5, %118 : vector<4x32xf32>
    %120 = vector.extract_strided_slice %0 {offsets = [0, 19], sizes = [4, 1], strides = [1, 1]} : vector<4x24xf32> to vector<4x1xf32>
    %121 = vector.extract_strided_slice %1 {offsets = [1, 0], sizes = [1, 32], strides = [1, 1]} : vector<3x32xf32> to vector<1x32xf32>
    %122 = vector.broadcast %120 : vector<4x1xf32> to vector<4x32xf32>
    %123 = vector.broadcast %121 : vector<1x32xf32> to vector<4x32xf32>
    %124 = arith.mulf %122, %123 : vector<4x32xf32>
    %125 = arith.addf %119, %124 : vector<4x32xf32>
    %126 = vector.extract_strided_slice %0 {offsets = [0, 20], sizes = [4, 1], strides = [1, 1]} : vector<4x24xf32> to vector<4x1xf32>
    %127 = vector.extract_strided_slice %1 {offsets = [2, 0], sizes = [1, 32], strides = [1, 1]} : vector<3x32xf32> to vector<1x32xf32>
    %128 = vector.broadcast %126 : vector<4x1xf32> to vector<4x32xf32>
    %129 = vector.broadcast %127 : vector<1x32xf32> to vector<4x32xf32>
    %130 = arith.mulf %128, %129 : vector<4x32xf32>
    %131 = arith.addf %125, %130 : vector<4x32xf32>
    %132 = vector.extract_strided_slice %0 {offsets = [0, 21], sizes = [4, 1], strides = [1, 1]} : vector<4x24xf32> to vector<4x1xf32>
    %133 = vector.extract_strided_slice %1 {offsets = [0, 0], sizes = [1, 32], strides = [1, 1]} : vector<3x32xf32> to vector<1x32xf32>
    %134 = vector.broadcast %132 : vector<4x1xf32> to vector<4x32xf32>
    %135 = vector.broadcast %133 : vector<1x32xf32> to vector<4x32xf32>
    %136 = arith.mulf %134, %135 : vector<4x32xf32>
    %137 = arith.addf %5, %136 : vector<4x32xf32>
    %138 = vector.extract_strided_slice %0 {offsets = [0, 22], sizes = [4, 1], strides = [1, 1]} : vector<4x24xf32> to vector<4x1xf32>
    %139 = vector.extract_strided_slice %1 {offsets = [1, 0], sizes = [1, 32], strides = [1, 1]} : vector<3x32xf32> to vector<1x32xf32>
    %140 = vector.broadcast %138 : vector<4x1xf32> to vector<4x32xf32>
    %141 = vector.broadcast %139 : vector<1x32xf32> to vector<4x32xf32>
    %142 = arith.mulf %140, %141 : vector<4x32xf32>
    %143 = arith.addf %137, %142 : vector<4x32xf32>
    %144 = vector.extract_strided_slice %0 {offsets = [0, 23], sizes = [4, 1], strides = [1, 1]} : vector<4x24xf32> to vector<4x1xf32>
    %145 = vector.extract_strided_slice %1 {offsets = [2, 0], sizes = [1, 32], strides = [1, 1]} : vector<3x32xf32> to vector<1x32xf32>
    %146 = vector.broadcast %144 : vector<4x1xf32> to vector<4x32xf32>
    %147 = vector.broadcast %145 : vector<1x32xf32> to vector<4x32xf32>
    %148 = arith.mulf %146, %147 : vector<4x32xf32>
    %149 = arith.addf %143, %148 : vector<4x32xf32>
    %150 = math.tanh %23 : vector<4x32xf32>
    %cst = arith.constant dense<0.000000e+00> : vector<4x32xf32>
    %151 = tpu.matmul %150, %2, %cst {dimension_numbers = #tpu.dot_dimension_numbers<[1], [0], [0], [1], [0, 0, 1, 1], [], []>} : vector<4x32xf32>, vector<32x32xf32>, vector<4x32xf32> -> vector<4x32xf32>
    %152 = arith.addf %41, %151 : vector<4x32xf32>
    %153 = math.tanh %152 : vector<4x32xf32>
    %cst_7 = arith.constant dense<0.000000e+00> : vector<4x32xf32>
    %154 = tpu.matmul %153, %2, %cst_7 {dimension_numbers = #tpu.dot_dimension_numbers<[1], [0], [0], [1], [0, 0, 1, 1], [], []>} : vector<4x32xf32>, vector<32x32xf32>, vector<4x32xf32> -> vector<4x32xf32>
    %155 = arith.addf %59, %154 : vector<4x32xf32>
    %156 = math.tanh %155 : vector<4x32xf32>
    %cst_8 = arith.constant dense<0.000000e+00> : vector<4x32xf32>
    %157 = tpu.matmul %156, %2, %cst_8 {dimension_numbers = #tpu.dot_dimension_numbers<[1], [0], [0], [1], [0, 0, 1, 1], [], []>} : vector<4x32xf32>, vector<32x32xf32>, vector<4x32xf32> -> vector<4x32xf32>
    %158 = arith.addf %77, %157 : vector<4x32xf32>
    %159 = math.tanh %158 : vector<4x32xf32>
    %cst_9 = arith.constant dense<0.000000e+00> : vector<4x32xf32>
    %160 = tpu.matmul %159, %2, %cst_9 {dimension_numbers = #tpu.dot_dimension_numbers<[1], [0], [0], [1], [0, 0, 1, 1], [], []>} : vector<4x32xf32>, vector<32x32xf32>, vector<4x32xf32> -> vector<4x32xf32>
    %161 = arith.addf %95, %160 : vector<4x32xf32>
    %162 = math.tanh %161 : vector<4x32xf32>
    %cst_10 = arith.constant dense<0.000000e+00> : vector<4x32xf32>
    %163 = tpu.matmul %162, %2, %cst_10 {dimension_numbers = #tpu.dot_dimension_numbers<[1], [0], [0], [1], [0, 0, 1, 1], [], []>} : vector<4x32xf32>, vector<32x32xf32>, vector<4x32xf32> -> vector<4x32xf32>
    %164 = arith.addf %113, %163 : vector<4x32xf32>
    %165 = math.tanh %164 : vector<4x32xf32>
    %cst_11 = arith.constant dense<0.000000e+00> : vector<4x32xf32>
    %166 = tpu.matmul %165, %2, %cst_11 {dimension_numbers = #tpu.dot_dimension_numbers<[1], [0], [0], [1], [0, 0, 1, 1], [], []>} : vector<4x32xf32>, vector<32x32xf32>, vector<4x32xf32> -> vector<4x32xf32>
    %167 = arith.addf %131, %166 : vector<4x32xf32>
    %168 = math.tanh %167 : vector<4x32xf32>
    %cst_12 = arith.constant dense<0.000000e+00> : vector<4x32xf32>
    %169 = tpu.matmul %168, %2, %cst_12 {dimension_numbers = #tpu.dot_dimension_numbers<[1], [0], [0], [1], [0, 0, 1, 1], [], []>} : vector<4x32xf32>, vector<32x32xf32>, vector<4x32xf32> -> vector<4x32xf32>
    %170 = arith.addf %149, %169 : vector<4x32xf32>
    %171 = math.tanh %170 : vector<4x32xf32>
    %c0_13 = arith.constant 0 : index
    %c0_14 = arith.constant 0 : index
    %172 = vector.load %arg4[%c0_13, %c0_14] : memref<32x5xf32, #tpu.memory_space<vmem>>, vector<32x5xf32>
    %cst_15 = arith.constant dense<0.000000e+00> : vector<4x5xf32>
    %173 = tpu.matmul %171, %172, %cst_15 {dimension_numbers = #tpu.dot_dimension_numbers<[1], [0], [0], [1], [0, 0, 1, 1], [], []>} : vector<4x32xf32>, vector<32x5xf32>, vector<4x5xf32> -> vector<4x5xf32>
    %c0_16 = arith.constant 0 : index
    %c0_17 = arith.constant 0 : index
    %174 = vector.load %arg5[%c0_16, %c0_17] : memref<1x5xf32, #tpu.memory_space<vmem>>, vector<1x5xf32>
    %175 = vector.broadcast %174 : vector<1x5xf32> to vector<4x5xf32>
    %176 = arith.addf %173, %175 : vector<4x5xf32>
    %c0_18 = arith.constant 0 : index
    %c0_19 = arith.constant 0 : index
    %177 = vector.load %arg6[%c0_18, %c0_19] : memref<4x5xf32, #tpu.memory_space<vmem>>, vector<4x5xf32>
    tpu.vector_store %arg6[%c0_18, %c0_19], %176 {strides = array<i32>} : memref<4x5xf32, #tpu.memory_space<vmem>>, vector<4x5xf32>,
    return
  }
}

</mosaic_0001>

<llo_original>
// kernel: rnn_forward.1
$region0: #{rnn_forward.1}
  #allocation0 [shape = 'u32[]', space=smem, size = 0x4, offset = 0x4, fixed_abs, tag = 'smem constant byte address 0x4 - core index']
  #allocation1 [shape = 'u32[72,128]{1,0:T(1,128)}', space=vmem, size = 0x9000, scoped, tag = 'internal scratch']
  %s0 = inlined_call_operand.vmem [shape: f32[4,24], index: 0, kind: input, shape index: {}]
  %s1 = inlined_call_operand.vmem [shape: f32[3,32], index: 1, kind: input, shape index: {}]
  %s2 = inlined_call_operand.vmem [shape: f32[32,32], index: 2, kind: input, shape index: {}]
  %s3 = inlined_call_operand.vmem [shape: f32[1,32], index: 3, kind: input, shape index: {}]
  %s4 = inlined_call_operand.vmem [shape: f32[32,5], index: 4, kind: input, shape index: {}]
  %s5 = inlined_call_operand.vmem [shape: f32[1,5], index: 5, kind: input, shape index: {}]
  %s6 = inlined_call_operand.hbm [shape: f32[4,5], index: 6, kind: output, shape index: {}]
  %s7 = sld [smem:[#allocation0]]
  $region34: #{rnn_forward.1} parent=0
    _
  %s9 = ssub.s32 1, %s7
  %s10 = scalar_select 0, %s9, %s7
  $region1: #{rnn_forward.1} parent=0
    #allocation2 [shape = 'u8[2048]{0}', space=vmem, size = 0x800, scoped, tag = 'output window, operand 0, single buffered']
    #allocation3 [shape = 's32[1]{0}', space=sflag, size = 0x4, scoped, tag = 'scoped memory for rnn_forward.1']
    %11 = vsyncpa [#allocation3], 0
    // Predicated region
    $region2: #{rnn_forward.1} parent=1 // pred_check
      _
    $region3: #{rnn_forward.1} parent=1 // pred_check_branch
      %13 = sbr.rel (0) target = $region5
    $region4: #{rnn_forward.1} parent=1 // pred_region
      _
    $region5: #{rnn_forward.1} parent=1 // pred_fallthru
      _
    // Predicated region
    $region6: #{rnn_forward.1} parent=1 // pred_check
      _
    $region7: #{rnn_forward.1} parent=1 // pred_check_branch
      %15 = sbr.rel (0) target = $region9
    $region8: #{rnn_forward.1} parent=1 // pred_region
      _
    $region9: #{rnn_forward.1} parent=1 // pred_fallthru
      _
    // Predicated region
    $region10: #{rnn_forward.1} parent=1 // pred_check
      _
    $region11: #{rnn_forward.1} parent=1 // pred_check_branch
      %17 = sbr.rel (0) target = $region13
    $region12: #{rnn_forward.1} parent=1 // pred_region
      _
    $region13: #{rnn_forward.1} parent=1 // pred_fallthru
      _
    // Predicated region
    $region14: #{rnn_forward.1} parent=1 // pred_check
      _
    $region15: #{rnn_forward.1} parent=1 // pred_check_branch
      %19 = sbr.rel (0) target = $region17
    $region16: #{rnn_forward.1} parent=1 // pred_region
      _
    $region17: #{rnn_forward.1} parent=1 // pred_fallthru
      _
    // Predicated region
    $region18: #{rnn_forward.1} parent=1 // pred_check
      _
    $region19: #{rnn_forward.1} parent=1 // pred_check_branch
      %21 = sbr.rel (0) target = $region21
    $region20: #{rnn_forward.1} parent=1 // pred_region
      _
    $region21: #{rnn_forward.1} parent=1 // pred_fallthru
      _
    // Predicated region
    $region22: #{rnn_forward.1} parent=1 // pred_check
      _
    $region23: #{rnn_forward.1} parent=1 // pred_check_branch
      %23 = sbr.rel (0) target = $region25
    $region24: #{rnn_forward.1} parent=1 // pred_region
      _
    $region25: #{rnn_forward.1} parent=1 // pred_fallthru
      _
    %v24 = vld [vmem:[%s0] sm:$0xf]
    %v25 = vld [vmem:[%s1] sm:$0x7]
    %v26 = vld [vmem:[%s2] sm:$0xff]
    %v27 = vld [vmem:[%s2 + $0x8] sm:$0xff]
    %v28 = vld [vmem:[%s2 + $0x10] sm:$0xff]
    %v29 = vld [vmem:[%s2 + $0x18] sm:$0xff]
    %v30 = vld [vmem:[%s3] sm:$0x1]
    %v32 = vperm.slane %v30, 0
    %35 = vset.pattern.permute.xlu0 0
    %36 = vperm.xlu0 %35, %v24
    %v37 = vpop.permute.xlu0 %36
    %v39 = vperm.slane %v25, 0
    %v40 = vmul.f32 %v37, %v39
    %v41 = vadd.f32 %v32, %v40
    %42 = vset.pattern.permute.xlu0 1
    %43 = vperm.xlu0 %42, %v24
    %v44 = vpop.permute.xlu0 %43
    %v46 = vperm.slane %v25, 1
    %v47 = vmul.f32 %v44, %v46
    %v48 = vadd.f32 %v41, %v47
    %49 = vset.pattern.permute.xlu0 2
    %50 = vperm.xlu0 %49, %v24
    %v51 = vpop.permute.xlu0 %50
    %v53 = vperm.slane %v25, 2
    %v54 = vmul.f32 %v51, %v53
    %v55 = vadd.f32 %v48, %v54
    %56 = vset.pattern.permute.xlu0 3
    %57 = vperm.xlu0 %56, %v24
    %v58 = vpop.permute.xlu0 %57
    %v60 = vmul.f32 %v58, %v39
    %v61 = vadd.f32 %v32, %v60
    %62 = vset.pattern.permute.xlu0 4
    %63 = vperm.xlu0 %62, %v24
    %v64 = vpop.permute.xlu0 %63
    %v66 = vmul.f32 %v64, %v46
    %v67 = vadd.f32 %v61, %v66
    %68 = vset.pattern.permute.xlu0 5
    %69 = vperm.xlu0 %68, %v24
    %v70 = vpop.permute.xlu0 %69
    %v72 = vmul.f32 %v70, %v53
    %v73 = vadd.f32 %v67, %v72
    %74 = vset.pattern.permute.xlu0 6
    %75 = vperm.xlu0 %74, %v24
    %v76 = vpop.permute.xlu0 %75
    %v78 = vmul.f32 %v76, %v39
    %v79 = vadd.f32 %v32, %v78
    %80 = vset.pattern.permute.xlu0 7
    %81 = vperm.xlu0 %80, %v24
    %v82 = vpop.permute.xlu0 %81
    %v84 = vmul.f32 %v82, %v46
    %v85 = vadd.f32 %v79, %v84
    %86 = vset.pattern.permute.xlu0 8
    %87 = vperm.xlu0 %86, %v24
    %v88 = vpop.permute.xlu0 %87
    %v90 = vmul.f32 %v88, %v53
    %v91 = vadd.f32 %v85, %v90
    %92 = vset.pattern.permute.xlu0 9
    %93 = vperm.xlu0 %92, %v24
    %v94 = vpop.permute.xlu0 %93
    %v96 = vmul.f32 %v94, %v39
    %v97 = vadd.f32 %v32, %v96
    %98 = vset.pattern.permute.xlu0 10
    %99 = vperm.xlu0 %98, %v24
    %v100 = vpop.permute.xlu0 %99
    %v102 = vmul.f32 %v100, %v46
    %v103 = vadd.f32 %v97, %v102
    %104 = vset.pattern.permute.xlu0 11
    %105 = vperm.xlu0 %104, %v24
    %v106 = vpop.permute.xlu0 %105
    %v108 = vmul.f32 %v106, %v53
    %v109 = vadd.f32 %v103, %v108
    %110 = vset.pattern.permute.xlu0 12
    %111 = vperm.xlu0 %110, %v24
    %v112 = vpop.permute.xlu0 %111
    %v114 = vmul.f32 %v112, %v39
    %v115 = vadd.f32 %v32, %v114
    %116 = vset.pattern.permute.xlu0 13
    %117 = vperm.xlu0 %116, %v24
    %v118 = vpop.permute.xlu0 %117
    %v120 = vmul.f32 %v118, %v46
    %v121 = vadd.f32 %v115, %v120
    %122 = vset.pattern.permute.xlu0 14
    %123 = vperm.xlu0 %122, %v24
    %v124 = vpop.permute.xlu0 %123
    %v126 = vmul.f32 %v124, %v53
    %v127 = vadd.f32 %v121, %v126
    %128 = vset.pattern.permute.xlu0 15
    %129 = vperm.xlu0 %128, %v24
    %v130 = vpop.permute.xlu0 %129
    %v132 = vmul.f32 %v130, %v39
    %v133 = vadd.f32 %v32, %v132
    %134 = vset.pattern.permute.xlu0 16
    %135 = vperm.xlu0 %134, %v24
    %v136 = vpop.permute.xlu0 %135
    %v138 = vmul.f32 %v136, %v46
    %v139 = vadd.f32 %v133, %v138
    %140 = vset.pattern.permute.xlu0 17
    %141 = vperm.xlu0 %140, %v24
    %v142 = vpop.permute.xlu0 %141
    %v144 = vmul.f32 %v142, %v53
    %v145 = vadd.f32 %v139, %v144
    %146 = vset.pattern.permute.xlu0 18
    %147 = vperm.xlu0 %146, %v24
    %v148 = vpop.permute.xlu0 %147
    %v150 = vmul.f32 %v148, %v39
    %v151 = vadd.f32 %v32, %v150
    %152 = vset.pattern.permute.xlu0 19
    %153 = vperm.xlu0 %152, %v24
    %v154 = vpop.permute.xlu0 %153
    %v156 = vmul.f32 %v154, %v46
    %v157 = vadd.f32 %v151, %v156
    %158 = vset.pattern.permute.xlu0 20
    %159 = vperm.xlu0 %158, %v24
    %v160 = vpop.permute.xlu0 %159
    %v162 = vmul.f32 %v160, %v53
    %v163 = vadd.f32 %v157, %v162
    %164 = vset.pattern.permute.xlu0 21
    %165 = vperm.xlu0 %164, %v24
    %v166 = vpop.permute.xlu0 %165
    %v168 = vmul.f32 %v166, %v39
    %v169 = vadd.f32 %v32, %v168
    %170 = vset.pattern.permute.xlu0 22
    %171 = vperm.xlu0 %170, %v24
    %v172 = vpop.permute.xlu0 %171
    %v174 = vmul.f32 %v172, %v46
    %v175 = vadd.f32 %v169, %v174
    %176 = vset.pattern.permute.xlu0 23
    %177 = vperm.xlu0 %176, %v24
    %v178 = vpop.permute.xlu0 %177
    %v180 = vmul.f32 %v178, %v53
    %v181 = vadd.f32 %v175, %v180
    %v182 = vtanh.pop %v55
    %vm183 = vcmask 261120
    %v185 = vsel %vm183, %v182, 0
    %187 = vmatpush.msra.mxu0 0.0
    %188 = vmatpush.msra.mxu0 0.0
    %189 = vmatpush.msra.mxu0 0.0
    %190 = vmatpush.msra.mxu0 0.0
    %191 = vmatpush.msra.mxu0 0.0
    %192 = vmatpush.msra.mxu0 0.0
    %193 = vmatpush.msra.mxu0 0.0
    %194 = vmatpush.msra.mxu0 0.0
    %195 = vmatpush.msra.mxu0 0.0
    %196 = vmatpush.msra.mxu0 0.0
    %197 = vmatpush.msra.mxu0 0.0
    %198 = vmatpush.msra.mxu0 0.0
    %199 = vmatpush.msra.mxu0 %v29
    %200 = vmatpush.msra.mxu0 %v28
    %201 = vmatpush.msra.mxu0 %v27
    %202 = vmatpush.msra.mxu0 %v26
    %203 = vmatmul.f32.gmra.mxu0 %v185
    %v204 = vpop.f32.mrf.mxu0
    %v205 = vadd.f32 0.0, %v204
    %206 = vdwg.mxu0
    %v207 = vadd.f32 %v73, %v205
    %v208 = vtanh.pop %v207
    %v210 = vsel %vm183, %v208, 0
    %212 = vmatpush.msra.mxu0 0.0
    %213 = vmatpush.msra.mxu0 0.0
    %214 = vmatpush.msra.mxu0 0.0
    %215 = vmatpush.msra.mxu0 0.0
    %216 = vmatpush.msra.mxu0 0.0
    %217 = vmatpush.msra.mxu0 0.0
    %218 = vmatpush.msra.mxu0 0.0
    %219 = vmatpush.msra.mxu0 0.0
    %220 = vmatpush.msra.mxu0 0.0
    %221 = vmatpush.msra.mxu0 0.0
    %222 = vmatpush.msra.mxu0 0.0
    %223 = vmatpush.msra.mxu0 0.0
    %224 = vmatpush.msra.mxu0 %v29
    %225 = vmatpush.msra.mxu0 %v28
    %226 = vmatpush.msra.mxu0 %v27
    %227 = vmatpush.msra.mxu0 %v26
    %228 = vmatmul.f32.gmra.mxu0 %v210
    %v229 = vpop.f32.mrf.mxu0
    %v230 = vadd.f32 0.0, %v229
    %231 = vdwg.mxu0
    %v232 = vadd.f32 %v91, %v230
    %v233 = vtanh.pop %v232
    %v235 = vsel %vm183, %v233, 0
    %237 = vmatpush.msra.mxu0 0.0
    %238 = vmatpush.msra.mxu0 0.0
    %239 = vmatpush.msra.mxu0 0.0
    %240 = vmatpush.msra.mxu0 0.0
    %241 = vmatpush.msra.mxu0 0.0
    %242 = vmatpush.msra.mxu0 0.0
    %243 = vmatpush.msra.mxu0 0.0
    %244 = vmatpush.msra.mxu0 0.0
    %245 = vmatpush.msra.mxu0 0.0
    %246 = vmatpush.msra.mxu0 0.0
    %247 = vmatpush.msra.mxu0 0.0
    %248 = vmatpush.msra.mxu0 0.0
    %249 = vmatpush.msra.mxu0 %v29
    %250 = vmatpush.msra.mxu0 %v28
    %251 = vmatpush.msra.mxu0 %v27
    %252 = vmatpush.msra.mxu0 %v26
    %253 = vmatmul.f32.gmra.mxu0 %v235
    %v254 = vpop.f32.mrf.mxu0
    %v255 = vadd.f32 0.0, %v254
    %256 = vdwg.mxu0
    %v257 = vadd.f32 %v109, %v255
    %v258 = vtanh.pop %v257
    %v260 = vsel %vm183, %v258, 0
    %262 = vmatpush.msra.mxu0 0.0
    %263 = vmatpush.msra.mxu0 0.0
    %264 = vmatpush.msra.mxu0 0.0
    %265 = vmatpush.msra.mxu0 0.0
    %266 = vmatpush.msra.mxu0 0.0
    %267 = vmatpush.msra.mxu0 0.0
    %268 = vmatpush.msra.mxu0 0.0
    %269 = vmatpush.msra.mxu0 0.0
    %270 = vmatpush.msra.mxu0 0.0
    %271 = vmatpush.msra.mxu0 0.0
    %272 = vmatpush.msra.mxu0 0.0
    %273 = vmatpush.msra.mxu0 0.0
    %274 = vmatpush.msra.mxu0 %v29
    %275 = vmatpush.msra.mxu0 %v28
    %276 = vmatpush.msra.mxu0 %v27
    %277 = vmatpush.msra.mxu0 %v26
    %278 = vmatmul.f32.gmra.mxu0 %v260
    %v279 = vpop.f32.mrf.mxu0
    %v280 = vadd.f32 0.0, %v279
    %281 = vdwg.mxu0
    %v282 = vadd.f32 %v127, %v280
    %v283 = vtanh.pop %v282
    %v285 = vsel %vm183, %v283, 0
    %287 = vmatpush.msra.mxu0 0.0
    %288 = vmatpush.msra.mxu0 0.0
    %289 = vmatpush.msra.mxu0 0.0
    %290 = vmatpush.msra.mxu0 0.0
    %291 = vmatpush.msra.mxu0 0.0
    %292 = vmatpush.msra.mxu0 0.0
    %293 = vmatpush.msra.mxu0 0.0
    %294 = vmatpush.msra.mxu0 0.0
    %295 = vmatpush.msra.mxu0 0.0
    %296 = vmatpush.msra.mxu0 0.0
    %297 = vmatpush.msra.mxu0 0.0
    %298 = vmatpush.msra.mxu0 0.0
    %299 = vmatpush.msra.mxu0 %v29
    %300 = vmatpush.msra.mxu0 %v28
    %301 = vmatpush.msra.mxu0 %v27
    %302 = vmatpush.msra.mxu0 %v26
    %303 = vmatmul.f32.gmra.mxu0 %v285
    %v304 = vpop.f32.mrf.mxu0
    %v305 = vadd.f32 0.0, %v304
    %306 = vdwg.mxu0
    %v307 = vadd.f32 %v145, %v305
    %v308 = vtanh.pop %v307
    %v310 = vsel %vm183, %v308, 0
    %312 = vmatpush.msra.mxu0 0.0
    %313 = vmatpush.msra.mxu0 0.0
    %314 = vmatpush.msra.mxu0 0.0
    %315 = vmatpush.msra.mxu0 0.0
    %316 = vmatpush.msra.mxu0 0.0
    %317 = vmatpush.msra.mxu0 0.0
    %318 = vmatpush.msra.mxu0 0.0
    %319 = vmatpush.msra.mxu0 0.0
    %320 = vmatpush.msra.mxu0 0.0
    %321 = vmatpush.msra.mxu0 0.0
    %322 = vmatpush.msra.mxu0 0.0
    %323 = vmatpush.msra.mxu0 0.0
    %324 = vmatpush.msra.mxu0 %v29
    %325 = vmatpush.msra.mxu0 %v28
    %326 = vmatpush.msra.mxu0 %v27
    %327 = vmatpush.msra.mxu0 %v26
    %328 = vmatmul.f32.gmra.mxu0 %v310
    %v329 = vpop.f32.mrf.mxu0
    %v330 = vadd.f32 0.0, %v329
    %331 = vdwg.mxu0
    %v332 = vadd.f32 %v163, %v330
    %v333 = vtanh.pop %v332
    %v335 = vsel %vm183, %v333, 0
    %337 = vmatpush.msra.mxu0 0.0
    %338 = vmatpush.msra.mxu0 0.0
    %339 = vmatpush.msra.mxu0 0.0
    %340 = vmatpush.msra.mxu0 0.0
    %341 = vmatpush.msra.mxu0 0.0
    %342 = vmatpush.msra.mxu0 0.0
    %343 = vmatpush.msra.mxu0 0.0
    %344 = vmatpush.msra.mxu0 0.0
    %345 = vmatpush.msra.mxu0 0.0
    %346 = vmatpush.msra.mxu0 0.0
    %347 = vmatpush.msra.mxu0 0.0
    %348 = vmatpush.msra.mxu0 0.0
    %349 = vmatpush.msra.mxu0 %v29
    %350 = vmatpush.msra.mxu0 %v28
    %351 = vmatpush.msra.mxu0 %v27
    %352 = vmatpush.msra.mxu0 %v26
    %353 = vmatmul.f32.gmra.mxu0 %v335
    %v354 = vpop.f32.mrf.mxu0
    %v355 = vadd.f32 0.0, %v354
    %356 = vdwg.mxu0
    %v357 = vadd.f32 %v181, %v355
    %v358 = vtanh.pop %v357
    %v359 = vld [vmem:[%s4] sm:$0xff]
    %v360 = vld [vmem:[%s4 + $0x8] sm:$0xff]
    %v361 = vld [vmem:[%s4 + $0x10] sm:$0xff]
    %v362 = vld [vmem:[%s4 + $0x18] sm:$0xff]
    %v363 = vld [vmem:[%s5] sm:$0x1]
    %v365 = vperm.slane %v363, 0
    %v368 = vsel %vm183, %v358, 0
    %370 = vmatpush.msra.mxu0 0.0
    %371 = vmatpush.msra.mxu0 0.0
    %372 = vmatpush.msra.mxu0 0.0
    %373 = vmatpush.msra.mxu0 0.0
    %374 = vmatpush.msra.mxu0 0.0
    %375 = vmatpush.msra.mxu0 0.0
    %376 = vmatpush.msra.mxu0 0.0
    %377 = vmatpush.msra.mxu0 0.0
    %378 = vmatpush.msra.mxu0 0.0
    %379 = vmatpush.msra.mxu0 0.0
    %380 = vmatpush.msra.mxu0 0.0
    %381 = vmatpush.msra.mxu0 0.0
    %382 = vmatpush.msra.mxu0 %v362
    %383 = vmatpush.msra.mxu0 %v361
    %384 = vmatpush.msra.mxu0 %v360
    %385 = vmatpush.msra.mxu0 %v359
    %386 = vmatmul.f32.gmra.mxu0 %v368
    %v387 = vpop.f32.mrf.mxu0
    %v388 = vadd.f32 %v365, %v387
    %389 = vdwg.mxu0
    %vm390 = vcmask 35840
    %391 = vst.msk [vmem:[#allocation2] sm:$0xf] %vm390, %v388
    // Predicated region
    $region26: #{rnn_forward.1} parent=1 // pred_check
      _
    $region27: #{rnn_forward.1} parent=1 // pred_check_branch
      %393 = sbr.rel (0) target = $region29
    $region28: #{rnn_forward.1} parent=1 // pred_region
      %395 = vsyncadd [#allocation3], 0
      %s397 = sshll.u32 [#allocation2], 4
      %s398 = int_to_ptr.vmem [resolvable:$true] %s397
      %s399 = sshll.u32 %s6, 4
      %s400 = int_to_ptr.hbm [resolvable:$true] %s399
      %402 = dma.vmem_to_hbm [thread:$0]  %s398, 64, %s400, [#allocation3]
    $region29: #{rnn_forward.1} parent=1 // pred_fallthru
      _
    // Predicated region
    $region30: #{rnn_forward.1} parent=1 // pred_check
      _
    $region31: #{rnn_forward.1} parent=1 // pred_check_branch
      %404 = sbr.rel (0) target = $region33
    $region32: #{rnn_forward.1} parent=1 // pred_region
      %406 = dma.done [#allocation3], 64
    $region33: #{rnn_forward.1} parent=1 // pred_fallthru
      _
    %407 = vsyncpa [#allocation3], 1

</llo_original>
